<compile_context>
chip_gen: v6e
topology: v6e:2x2x1
jax: 0.10.0
libtpu: 0.0.40
codegen_flags: <defaults>
</compile_context>

<pallas_src>
import functools

import jax
import jax.numpy as jnp
from jax.experimental import pallas as pl
from jax.experimental.pallas import tpu as pltpu

_MAX_TB_L1 = 256   # batch rows per L1 tile (multiple of 8 whenever it tiles)
_MAX_TB_CE = 128   # batch rows per CE tile (keeps (tb,128) accumulators light)


def _round_up(x, m):
    return ((x + m - 1) // m) * m


def _chip_info():
    """Best-effort (physical VMEM bytes, TensorCores per chip)."""
    kind = ""
    try:
        kind = jax.devices()[0].device_kind.lower()
    except Exception:
        pass
    n_tc = 2 if "v7" in kind else 1
    vmem = None
    try:
        get_info = getattr(pltpu, "get_tpu_info", None)
        if get_info is not None:
            vmem = int(getattr(get_info(), "vmem_capacity_bytes", 0)) or None
    except Exception:
        vmem = None
    if vmem is None:
        vmem = (64 if "v7" in kind else 128) * 1024 * 1024
    return vmem, n_tc


def _auto_config(B, C, *, max_tb):
    """Generation-aware (tb, tc, vmem_limit_bytes)."""
    vmem, n_tc = _chip_info()
    # leave headroom below physical VMEM for compiler-internal scratch/spill
    vmem_limit = max(32 * 1024 * 1024,
                     min(vmem - 16 * 1024 * 1024, 96 * 1024 * 1024))
    max_tc = 8192 if vmem_limit >= 64 * 1024 * 1024 else 4096

    tb = B if B <= max_tb else max_tb              # full dim, or multiple of 8
    tc = C if C <= max_tc else max_tc              # full dim, or multiple of 128

    # v7x: guarantee >= 2 batch tiles so the "parallel" axis feeds both
    # TensorCores (neutral on single-TC chips).
    if n_tc > 1 and B > 8 and pl.cdiv(B, tb) < n_tc:
        tb = max(8, _round_up(pl.cdiv(B, n_tc), 8))
    return tb, tc, vmem_limit


def _compiler_params(vmem_limit):
    return pltpu.CompilerParams(
        dimension_semantics=("parallel", "arbitrary"),
        vmem_limit_bytes=int(vmem_limit),
    )


# ------------------------------- L1 path -----------------------------------
def _l1_kernel(s_ref, t_ref, out_ref, *, B, C, tb, tc):
    i = pl.program_id(0)            # batch tile  ("parallel")
    c = pl.program_id(1)            # class tile  ("arbitrary", innermost)
    nb = pl.num_programs(0)
    nc = pl.num_programs(1)

    @pl.when(c == 0)
    def _init():
        out_ref[...] = jnp.zeros_like(out_ref)

    dense = (tb % 8 == 0) and (tc % 128 == 0)
    need_row_mask = (B % tb != 0)
    need_col_mask = (C % tc != 0)

    def accumulate(mask_rows, mask_cols):
        if dense:
            n_cols = tc // 128

            def row_body(rg, lane_acc):
                r = pl.multiple_of(rg * 8, 8)
                for j in range(n_cols):
                    sl = s_ref[pl.ds(r, 8), pl.ds(j * 128, 128)]
                    tl = t_ref[pl.ds(r, 8), pl.ds(j * 128, 128)]
                    # |s-t| in the input dtype; f32 cast folded per (8,128) chunk
                    d = jnp.abs(sl - tl).astype(jnp.float32)
                    if mask_rows or mask_cols:
                        valid = None
                        if mask_rows:
                            rid = (jax.lax.broadcasted_iota(jnp.int32, (8, 128), 0)
                                   + i * tb + r)
                            valid = rid < B
                        if mask_cols:
                            cid = (jax.lax.broadcasted_iota(jnp.int32, (8, 128), 1)
                                   + c * tc + j * 128)
                            cv = cid < C
                            valid = cv if valid is None else (valid & cv)
                        # select form: padded garbage (Inf/NaN) must not propagate
                        d = jnp.where(valid, d, jnp.zeros_like(d))
                    lane_acc = lane_acc + d
                return lane_acc

            lane = jax.lax.fori_loop(0, tb // 8, row_body,
                                     jnp.zeros((8, 128), jnp.float32))
            out_ref[...] = out_ref[...] + lane[None]
        else:
            # small / non-aligned tiles: simple full-tile reduce
            d = jnp.abs(s_ref[...] - t_ref[...]).astype(jnp.float32)
            valid = None
            if mask_rows:
                rid = jax.lax.broadcasted_iota(jnp.int32, (tb, tc), 0) + i * tb
                valid = rid < B
            if mask_cols:
                cid = jax.lax.broadcasted_iota(jnp.int32, (tb, tc), 1) + c * tc
                cv = cid < C
                valid = cv if valid is None else (valid & cv)
            if valid is not None:
                d = jnp.where(valid, d, jnp.zeros_like(d))
            out_ref[...] += jnp.sum(d)

    if not need_row_mask and not need_col_mask:
        accumulate(False, False)          # divisible: no masking anywhere
    else:
        conds = []
        if need_row_mask:
            conds.append(i == nb - 1)
        if need_col_mask:
            conds.append(c == nc - 1)
        edge = conds[0]
        for extra in conds[1:]:
            edge = jnp.logical_or(edge, extra)

        @pl.when(jnp.logical_not(edge))
        def _interior():
            accumulate(False, False)

        @pl.when(edge)
        def _edge():
            accumulate(need_row_mask, need_col_mask)


def l1_loss_pallas(student_logits, teacher_logits, *, tb=None, tc=None):
    assert student_logits.shape == teacher_logits.shape
    B, C = student_logits.shape
    tb_d, tc_d, vmem_limit = _auto_config(B, C, max_tb=_MAX_TB_L1)
    tb = tb_d if tb is None else tb
    tc = tc_d if tc is None else tc
    nb, nc = pl.cdiv(B, tb), pl.cdiv(C, tc)

    kernel = functools.partial(_l1_kernel, B=B, C=C, tb=tb, tc=tc)
    itemsize = jnp.dtype(student_logits.dtype).itemsize
    partials = pl.pallas_call(
        kernel,
        out_shape=jax.ShapeDtypeStruct((nb, 8, 128), jnp.float32),
        grid=(nb, nc),
        in_specs=[
            pl.BlockSpec((tb, tc), lambda i, c: (i, c)),
            pl.BlockSpec((tb, tc), lambda i, c: (i, c)),
        ],
        out_specs=pl.BlockSpec((1, 8, 128), lambda i, c: (i, 0, 0)),
        compiler_params=_compiler_params(vmem_limit),
        cost_estimate=pl.CostEstimate(
            flops=3 * B * C, transcendentals=0,
            bytes_accessed=2 * B * C * itemsize),
    )(student_logits, teacher_logits)

    dense = (tb % 8 == 0) and (tc % 128 == 0)
    total = jnp.sum(partials) if dense else jnp.sum(partials[:, 0, 0])
    return total / jnp.float32(B * C)


# --------------------------- Cross-entropy path ------------------------------
def _ce_kernel(logits_ref, out_ref, m_scr, l_scr, *, B, C, tb, tc):
    del B  # padded rows are trimmed in the wrapper; no in-kernel row mask needed
    c = pl.program_id(1)            # class tile  ("arbitrary", innermost)
    nc = pl.num_programs(1)

    lane_partial = (tc % 128 == 0)
    ragged_c = (C % tc != 0)        # only possible when nc >= 2 (tc is 128-aligned)

    if lane_partial:
        n_chunks = tc // 128

        @pl.when(c == 0)
        def _init():
            m_scr[...] = jnp.full_like(m_scr, -jnp.inf)
            l_scr[...] = jnp.zeros_like(l_scr)

        def chunk(j):
            xc = logits_ref[:, j * 128:(j + 1) * 128].astype(jnp.float32)
            if ragged_c:
                cid = (jax.lax.broadcasted_iota(jnp.int32, (tb, 128), 1)
                       + c * tc + j * 128)
                # select form: padded-column garbage must not propagate
                xc = jnp.where(cid < C, xc, -jnp.inf)
            return xc

        # pass 1: per-lane-position max of this class tile (pure VPU, no XLU)
        tile_m = chunk(0)
        for j in range(1, n_chunks):
            tile_m = jnp.maximum(tile_m, chunk(j))
        m_prev = m_scr[...]
        m_new = jnp.maximum(m_prev, tile_m)

        # pass 2: per-lane-position exp-sum (EUP + VPU, no XLU)
        s = jnp.exp(chunk(0) - m_new)
        for j in range(1, n_chunks):
            s = s + jnp.exp(chunk(j) - m_new)

        l_scr[...] = jnp.exp(m_prev - m_new) * l_scr[...] + s
        m_scr[...] = m_new

        @pl.when(c == nc - 1)
        def _finalize():
            # single cross-lane collapse per batch tile
            m = m_scr[...]
            l = l_scr[...]
            mrow = jnp.max(m, axis=-1, keepdims=True)                       # (tb,1)
            lrow = jnp.sum(l * jnp.exp(m - mrow), axis=-1, keepdims=True)   # (tb,1)
            lse = mrow + jnp.log(lrow)
            out_ref[...] = jnp.broadcast_to(lse, out_ref.shape)
    else:
        # tc == C (single class tile, C not a multiple of 128): plain row LSE.
        x = logits_ref[...].astype(jnp.float32)
        m = jnp.max(x, axis=-1, keepdims=True)
        lse = m + jnp.log(jnp.sum(jnp.exp(x - m), axis=-1, keepdims=True))
        out_ref[...] = jnp.broadcast_to(lse, out_ref.shape)


def cross_entropy_pallas(student_logits, teacher_labels, *, tb=None, tc=None):
    B, C = student_logits.shape
    tb_d, tc_d, vmem_limit = _auto_config(B, C, max_tb=_MAX_TB_CE)
    tb = tb_d if tb is None else tb
    tc = tc_d if tc is None else tc
    nb, nc = pl.cdiv(B, tb), pl.cdiv(C, tc)

    kernel = functools.partial(_ce_kernel, B=B, C=C, tb=tb, tc=tc)
    itemsize = jnp.dtype(student_logits.dtype).itemsize
    # kernel emits per-row log-sum-exp, lane-broadcast to a 128-wide output block
    lse = pl.pallas_call(
        kernel,
        out_shape=jax.ShapeDtypeStruct((nb * tb, 128), jnp.float32),
        grid=(nb, nc),
        in_specs=[pl.BlockSpec((tb, tc), lambda i, c: (i, c))],
        out_specs=pl.BlockSpec((tb, 128), lambda i, c: (i, 0)),
        scratch_shapes=[
            pltpu.VMEM((tb, 128), jnp.float32),   # per-lane running max
            pltpu.VMEM((tb, 128), jnp.float32),   # per-lane running exp-sum
        ],
        compiler_params=_compiler_params(vmem_limit),
        cost_estimate=pl.CostEstimate(
            flops=4 * B * C, transcendentals=B * C,
            bytes_accessed=B * C * itemsize),
    )(student_logits)

    # label-logit gather hoisted out of the kernel (tiny XLA gather)
    labels = teacher_labels.astype(jnp.int32)
    picked = jnp.take_along_axis(student_logits.astype(jnp.float32),
                                 labels[:, None], axis=1)[:, 0]
    per_row = lse[:B, 0] - picked          # padded rows (>= B) are sliced away
    return jnp.sum(per_row) / jnp.float32(B)


# ------------------------------ Module wrapper -------------------------------
def distillation_loss(teacher_labels, teacher_logits, student_logits, loss="l1"):
    """Forward pass of DistillationLoss.

    loss='l1' -> mean absolute error between student and teacher logits.
    loss='ce' -> cross entropy between student logits and teacher (hard) labels.
    """
    if loss == "l1":
        return l1_loss_pallas(student_logits, teacher_logits)
    elif loss == "ce":
        return cross_entropy_pallas(student_logits, teacher_labels)
    else:
        raise ValueError(f"unknown loss {loss!r}")


# -------------------------------- Demo / check --------------------------------
if __name__ == "__main__":
    key = jax.random.PRNGKey(0)
    k1, k2, k3, k4, k5, k6, k7, k8, k9 = jax.random.split(key, 9)

    # --- case 1: small, single-tile (module's toy shapes) ---
    B, C = 8, 32
    teacher_logits = jax.random.normal(k1, (B, C), dtype=jnp.float32)
    student_logits = jax.random.normal(k2, (B, C), dtype=jnp.float32)
    teacher_labels = jax.random.randint(k3, (B,), 0, C, dtype=jnp.int32)

    l1 = jax.block_until_ready(
        distillation_loss(teacher_labels, teacher_logits, student_logits, "l1"))
    l1_ref = jnp.mean(jnp.abs(student_logits - teacher_logits))
    assert jnp.allclose(l1, l1_ref, rtol=1e-5, atol=1e-5), (l1, l1_ref)

    ce = jax.block_until_ready(
        distillation_loss(teacher_labels, teacher_logits, student_logits, "ce"))
    logp = jax.nn.log_softmax(student_logits, axis=-1)
    ce_ref = -jnp.mean(logp[jnp.arange(B), teacher_labels])
    assert jnp.allclose(ce, ce_ref, rtol=1e-5, atol=1e-5), (ce, ce_ref)

    # --- case 2: forced multi-block grid with ragged batch & class tails ---
    B2, C2, tb2, tc2 = 20, 160, 8, 128   # nb=3, nc=2, both axes ragged
    t2 = jax.random.normal(k4, (B2, C2), dtype=jnp.float32)
    s2 = jax.random.normal(k5, (B2, C2), dtype=jnp.float32)
    y2 = jax.random.randint(k6, (B2,), 0, C2, dtype=jnp.int32)

    l1b = jax.block_until_ready(l1_loss_pallas(s2, t2, tb=tb2, tc=tc2))
    l1b_ref = jnp.mean(jnp.abs(s2 - t2))
    assert jnp.allclose(l1b, l1b_ref, rtol=1e-5, atol=1e-5), (l1b, l1b_ref)

    ceb = jax.block_until_ready(cross_entropy_pallas(s2, y2, tb=tb2, tc=tc2))
    logp2 = jax.nn.log_softmax(s2, axis=-1)
    ceb_ref = -jnp.mean(logp2[jnp.arange(B2), y2])
    assert jnp.allclose(ceb, ceb_ref, rtol=1e-5, atol=1e-5), (ceb, ceb_ref)

    # --- case 3: default (generation-aware) tile picking, 128-aligned C ---
    B3, C3 = 64, 512
    t3 = jax.random.normal(k7, (B3, C3), dtype=jnp.float32)
    s3 = jax.random.normal(k8, (B3, C3), dtype=jnp.float32)
    y3 = jax.random.randint(k9, (B3,), 0, C3, dtype=jnp.int32)

    l1c = jax.block_until_ready(l1_loss_pallas(s3, t3))
    l1c_ref = jnp.mean(jnp.abs(s3 - t3))
    assert jnp.allclose(l1c, l1c_ref, rtol=1e-5, atol=1e-5), (l1c, l1c_ref)

    cec = jax.block_until_ready(cross_entropy_pallas(s3, y3))
    logp3 = jax.nn.log_softmax(s3, axis=-1)
    cec_ref = -jnp.mean(logp3[jnp.arange(B3), y3])
    assert jnp.allclose(cec, cec_ref, rtol=1e-5, atol=1e-5), (cec, cec_ref)

    print("KERNEL_OK")
</pallas_src>

<mosaic_0001>
module attributes {stable_mosaic.version = 11 : i64} {
  func.func @_l1_kernel(%arg0: i32, %arg1: i32, %arg2: memref<8x32xf32, #tpu.memory_space<vmem>>, %arg3: memref<8x32xf32, #tpu.memory_space<vmem>>, %arg4: memref<1x8x128xf32, #tpu.memory_space<vmem>>) attributes {dimension_semantics = [#tpu.dimension_semantics<parallel>, #tpu.dimension_semantics<arbitrary>], iteration_bounds = array<i64: 1, 1>, scalar_prefetch = 0 : i64, scratch_operands = 0 : i64, tpu.core_type = #tpu.core_type<tc>, window_params = [{transform_indices = @transform_0, window_bounds = array<i64: 8, 32>}, {transform_indices = @transform_1, window_bounds = array<i64: 8, 32>}, {transform_indices = @transform_2, window_bounds = array<i64: 1, 8, 128>}]} {
    %c0_i32 = arith.constant 0 : i32
    %0 = arith.cmpi eq, %arg1, %c0_i32 : i32
    %1 = arith.extui %0 : i1 to i32
    %c0_i32_0 = arith.constant 0 : i32
    %2 = arith.cmpi ne, %1, %c0_i32_0 : i32
    scf.if %2 {
      %cst_10 = arith.constant 0.000000e+00 : f32
      %15 = vector.broadcast %cst_10 : f32 to vector<1x8x128xf32>
      %c0_11 = arith.constant 0 : index
      %c0_12 = arith.constant 0 : index
      %c0_13 = arith.constant 0 : index
      %16 = vector.load %arg4[%c0_11, %c0_12, %c0_13] : memref<1x8x128xf32, #tpu.memory_space<vmem>>, vector<1x8x128xf32>
      tpu.vector_store %arg4[%c0_11, %c0_12, %c0_13], %15 {strides = array<i32>} : memref<1x8x128xf32, #tpu.memory_space<vmem>>, vector<1x8x128xf32>,
    } else {
    }
    %c0 = arith.constant 0 : index
    %c0_1 = arith.constant 0 : index
    %3 = vector.load %arg2[%c0, %c0_1] : memref<8x32xf32, #tpu.memory_space<vmem>>, vector<8x32xf32>
    %c0_2 = arith.constant 0 : index
    %c0_3 = arith.constant 0 : index
    %4 = vector.load %arg3[%c0_2, %c0_3] : memref<8x32xf32, #tpu.memory_space<vmem>>, vector<8x32xf32>
    %5 = arith.subf %3, %4 : vector<8x32xf32>
    %6 = math.absf %5 : vector<8x32xf32>
    %c0_4 = arith.constant 0 : index
    %c0_5 = arith.constant 0 : index
    %c0_6 = arith.constant 0 : index
    %7 = vector.load %arg4[%c0_4, %c0_5, %c0_6] : memref<1x8x128xf32, #tpu.memory_space<vmem>>, vector<1x8x128xf32>
    %8 = vector.shape_cast %6 : vector<8x32xf32> to vector<1x8x32xf32>
    %cst = arith.constant dense<0.000000e+00> : vector<1xf32>
    %9 = vector.multi_reduction <add>, %8, %cst [1, 2] : vector<1x8x32xf32> to vector<1xf32>
    %10 = vector.shape_cast %9 : vector<1xf32> to vector<1x1x1xf32>
    %11 = vector.extract %10[0, 0, 0] : f32 from vector<1x1x1xf32>
    %12 = vector.broadcast %11 : f32 to vector<1x8x128xf32>
    %13 = arith.addf %7, %12 : vector<1x8x128xf32>
    %c0_7 = arith.constant 0 : index
    %c0_8 = arith.constant 0 : index
    %c0_9 = arith.constant 0 : index
    %14 = vector.load %arg4[%c0_7, %c0_8, %c0_9] : memref<1x8x128xf32, #tpu.memory_space<vmem>>, vector<1x8x128xf32>
    tpu.vector_store %arg4[%c0_7, %c0_8, %c0_9], %13 {strides = array<i32>} : memref<1x8x128xf32, #tpu.memory_space<vmem>>, vector<1x8x128xf32>,
    return
  }
  func.func @transform_0(%arg0: i32, %arg1: i32) -> (i32, i32) {
    %c0_i32 = arith.constant 0 : i32
    return %arg0, %arg1 : i32, i32
  }
  func.func @transform_1(%arg0: i32, %arg1: i32) -> (i32, i32) {
    %c0_i32 = arith.constant 0 : i32
    return %arg0, %arg1 : i32, i32
  }
  func.func @transform_2(%arg0: i32, %arg1: i32) -> (i32, i32, i32) {
    %c0_i32 = arith.constant 0 : i32
    %c0_i32_0 = arith.constant 0 : i32
    %c0_i32_1 = arith.constant 0 : i32
    return %arg0, %c0_i32, %c0_i32_0 : i32, i32, i32
  }
}

</mosaic_0001>

<llo_original>
// kernel: tpu_custom_call.1
$region0: #{tpu_custom_call.1}
  #allocation0 [shape = 'u32[]', space=smem, size = 0x4, offset = 0x4, fixed_abs, tag = 'smem constant byte address 0x4 - core index']
  #allocation1 [shape = 'u32[144,128]{1,0:T(1,128)}', space=vmem, size = 0x12000, scoped, tag = 'internal scratch']
  %s0 = inlined_call_operand.hbm [shape: f32[8,32], index: 0, kind: input, shape index: {}]
  %s1 = inlined_call_operand.hbm [shape: f32[8,32], index: 1, kind: input, shape index: {}]
  %s2 = inlined_call_operand.hbm [shape: f32[1,8,128], index: 2, kind: output, shape index: {}]
  %s3 = sld [smem:[#allocation0]]
  $region30: #{tpu_custom_call.1} parent=0
    _
  %s5 = ssub.s32 1, %s3
  %s6 = scalar_select 0, %s5, %s3
  $region1: #{tpu_custom_call.1} parent=0
    #allocation2 [shape = 'u8[4096]{0}', space=vmem, size = 0x1000, scoped, tag = 'input window, operand 0, single buffered']
    #allocation3 [shape = 's32[1]{0}', space=sflag, size = 0x4, scoped, tag = 'scoped memory for tpu_custom_call.1']
    #allocation4 [shape = 's32[1]{0}', space=sflag, size = 0x4, scoped, tag = 'scoped memory for tpu_custom_call.1']
    #allocation5 [shape = 'u8[4096]{0}', space=vmem, size = 0x1000, scoped, tag = 'input window, operand 1, single buffered']
    #allocation6 [shape = 's32[1]{0}', space=sflag, size = 0x4, scoped, tag = 'scoped memory for tpu_custom_call.1']
    #allocation7 [shape = 'u8[4096]{0}', space=vmem, size = 0x1000, scoped, tag = 'output window, operand 0, single buffered']
    %7 = vsyncpa [#allocation3], 0
    %8 = vsyncpa [#allocation6], 0
    %9 = vsyncpa [#allocation4], 0
    // Predicated region
    $region2: #{tpu_custom_call.1} parent=1 // pred_check
      _
    $region3: #{tpu_custom_call.1} parent=1 // pred_check_branch
      %11 = sbr.rel (0) target = $region5
    $region4: #{tpu_custom_call.1} parent=1 // pred_region
      %s13 = ssub.s32 128, 128
      %14 = vsyncadd [#allocation3], %s13
      %s16 = sshll.u32 [#allocation2], 4
      %s17 = int_to_ptr.vmem [resolvable:$true] %s16
      %19 = dma.hbm_to_vmem [thread:$0]  %s0, 128, %s17, [#allocation3]
    $region5: #{tpu_custom_call.1} parent=1 // pred_fallthru
      _
    // Predicated region
    $region6: #{tpu_custom_call.1} parent=1 // pred_check
      _
    $region7: #{tpu_custom_call.1} parent=1 // pred_check_branch
      %21 = sbr.rel (0) target = $region9
    $region8: #{tpu_custom_call.1} parent=1 // pred_region
      %s23 = ssub.s32 128, 128
      %24 = vsyncadd [#allocation6], %s23
      %s26 = sshll.u32 [#allocation5], 4
      %s27 = int_to_ptr.vmem [resolvable:$true] %s26
      %29 = dma.hbm_to_vmem [thread:$0]  %s1, 128, %s27, [#allocation6]
    $region9: #{tpu_custom_call.1} parent=1 // pred_fallthru
      _
    // Predicated region
    $region10: #{tpu_custom_call.1} parent=1 // pred_check
      _
    $region11: #{tpu_custom_call.1} parent=1 // pred_check_branch
      %31 = sbr.rel (0) target = $region13
    $region12: #{tpu_custom_call.1} parent=1 // pred_region
      %32 = dma.done [#allocation3], 128
    $region13: #{tpu_custom_call.1} parent=1 // pred_fallthru
      _
    // Predicated region
    $region14: #{tpu_custom_call.1} parent=1 // pred_check
      _
    $region15: #{tpu_custom_call.1} parent=1 // pred_check_branch
      %34 = sbr.rel (0) target = $region17
    $region16: #{tpu_custom_call.1} parent=1 // pred_region
      %35 = dma.done [#allocation6], 128
    $region17: #{tpu_custom_call.1} parent=1 // pred_fallthru
      _
    %p36 = scmp.eq.s32.totalorder 0, 0
    // Predicated region
    $region18: #{tpu_custom_call.1} parent=1 // pred_check
      %p37 = pneg %p36
    $region19: #{tpu_custom_call.1} parent=1 // pred_check_branch
      %39 = sbr.rel (%p37) target = $region21
    $region20: #{tpu_custom_call.1} parent=1 // pred_region
      %40 = vst [vmem:[#allocation7] sm:$0xff] 0.0
    $region21: #{tpu_custom_call.1} parent=1 // pred_fallthru
      _
    %v41 = vld [vmem:[#allocation2] sm:$0xff]
    %v42 = vld [vmem:[#allocation5] sm:$0xff]
    %v43 = vsub.f32 %v41, %v42
    %v44 = vand.u32 2147483647, %v43
    %v45 = vld [vmem:[#allocation7] sm:$0xff]
    %vm46 = vcmask 261120
    %v47 = vsel %vm46, %v44, 0.0
    %48 = vadd.xlane.f32.xlu0 %v47
    %v49 = vpop.xlane.xlu0 %48
    %v50 = vrot.slane %v49, 4
    %v51 = vadd.f32 %v49, %v50
    %v52 = vrot.slane %v51, 2
    %v53 = vadd.f32 %v51, %v52
    %v54 = vrot.slane %v53, 1
    %v55 = vadd.f32 %v53, %v54
    %s56 = vtos %v55
    %v57 = vstv %s56
    %v58 = vadd.f32 %v45, %v57
    %59 = vst [vmem:[#allocation7] sm:$0xff] %v58
    // Predicated region
    $region22: #{tpu_custom_call.1} parent=1 // pred_check
      _
    $region23: #{tpu_custom_call.1} parent=1 // pred_check_branch
      %61 = sbr.rel (0) target = $region25
    $region24: #{tpu_custom_call.1} parent=1 // pred_region
      %s63 = ssub.s32 128, 128
      %64 = vsyncadd [#allocation4], %s63
      %s66 = sshll.u32 [#allocation7], 4
      %s67 = int_to_ptr.vmem [resolvable:$true] %s66
      %69 = dma.vmem_to_hbm [thread:$0]  %s67, 128, %s2, [#allocation4]
    $region25: #{tpu_custom_call.1} parent=1 // pred_fallthru
      _
    // Predicated region
    $region26: #{tpu_custom_call.1} parent=1 // pred_check
      _
    $region27: #{tpu_custom_call.1} parent=1 // pred_check_branch
      %71 = sbr.rel (0) target = $region29
    $region28: #{tpu_custom_call.1} parent=1 // pred_region
      %72 = dma.done [#allocation4], 128
    $region29: #{tpu_custom_call.1} parent=1 // pred_fallthru
      _
    %73 = vsyncpa [#allocation3], 1
    %74 = vsyncpa [#allocation6], 1
    %75 = vsyncpa [#allocation4], 1

</llo_original>
